<compile_context>
chip_gen: v5e
topology: v5e:2x2
jax: 0.10.0
libtpu: 0.0.40
codegen_flags: <defaults>
</compile_context>

<pallas_src>
import functools

import jax
import jax.numpy as jnp
from jax.experimental import pallas as pl
from jax.experimental.pallas import tpu as pltpu


def _encoder_kernel(x_ref, w_ref, bn_ref, hw_ref, hb_ref, out_ref, h_ref, *, eps):
    layer = pl.program_id(0)
    n_layers = pl.num_programs(0)

    @pl.when(layer == 0)
    def _():
        h_ref[...] = x_ref[...].astype(jnp.float32)

    # Linear (no bias): h @ W, W pre-transposed to (in, out). MXU, f32 accumulation.
    h = jnp.dot(h_ref[...].astype(w_ref.dtype), w_ref[0],
                preferred_element_type=jnp.float32)

    # BatchNorm1d (training mode: batch stats, biased variance).
    # Single-pass statistics + affine folded into one scale/shift FMA, then ReLU.
    inv_b = jnp.float32(1.0 / h.shape[0])
    mean = jnp.sum(h, axis=0, keepdims=True) * inv_b
    ex2 = jnp.sum(h * h, axis=0, keepdims=True) * inv_b
    var = ex2 - mean * mean
    gamma = bn_ref[0, 0:1, :]                       # (1, F) streamed for this layer
    beta = bn_ref[0, 1:2, :]                        # (1, F)
    scale = gamma * jax.lax.rsqrt(var + eps)        # rsqrt -> EUP slot
    shift = beta - mean * scale
    h = jnp.maximum(h * scale + shift, 0.0)
    h_ref[...] = h

    # Fused heads (mu ++ logvar, zero-padded to lane-dense width) on the last layer.
    @pl.when(layer == n_layers - 1)
    def _():
        out_ref[...] = (jnp.dot(h.astype(hw_ref.dtype), hw_ref[...],
                                preferred_element_type=jnp.float32)
                        + hb_ref[...])


def _heads_only_kernel(x_ref, hw_ref, hb_ref, out_ref):
    # n_layers == 0 path: features are the input itself.
    out_ref[...] = (jnp.dot(x_ref[...].astype(hw_ref.dtype), hw_ref[...],
                            preferred_element_type=jnp.float32) + hb_ref[...])


def feature_encoder_forward(x, params, *, n_layers, eps=1e-5, deterministic=False,
                            compute_dtype=jnp.float32):
    """x: (B, in_features) float32. Returns (mus, logvars) or mus if deterministic."""
    B, F = x.shape
    L = params["mu_w"].shape[1]

    # --- Fuse heads into one matmul and pad output width to a lane-dense multiple of 128.
    if deterministic:
        head_w = params["mu_w"]
        head_b = params["mu_b"]
        n_out = L
    else:
        head_w = jnp.concatenate([params["mu_w"], params["lv_w"]], axis=1)   # (F, 2L)
        head_b = jnp.concatenate([params["mu_b"], params["lv_b"]], axis=1)   # (1, 2L)
        n_out = 2 * L
    P = ((n_out + 127) // 128) * 128
    head_w = jnp.pad(head_w, ((0, 0), (0, P - n_out))).astype(compute_dtype)  # (F, P)
    head_b = jnp.pad(head_b, ((0, 0), (0, P - n_out)))                        # (1, P)

    out_shape = jax.ShapeDtypeStruct((B, P), jnp.float32)
    vmem_spec = pl.BlockSpec(memory_space=pltpu.MemorySpace.VMEM)

    if n_layers == 0:
        out = pl.pallas_call(
            _heads_only_kernel,
            out_shape=out_shape,
            in_specs=[vmem_spec, vmem_spec, vmem_spec],
            out_specs=vmem_spec,
        )(x, head_w, head_b)
    else:
        feat_w = params["feat_w"].astype(compute_dtype)   # (n_layers, F, F), (in,out)
        bn = params["bn"]                                  # (n_layers, 2, F) f32

        kernel = functools.partial(_encoder_kernel, eps=eps)

        bytes_accessed = int(
            x.size * x.dtype.itemsize
            + feat_w.size * feat_w.dtype.itemsize
            + bn.size * bn.dtype.itemsize
            + head_w.size * head_w.dtype.itemsize
            + head_b.size * head_b.dtype.itemsize
            + B * P * 4)
        cost = pl.CostEstimate(
            flops=int(2 * B * F * F * n_layers + 2 * B * F * P + 8 * B * F * n_layers),
            transcendentals=int(n_layers * F),
            bytes_accessed=bytes_accessed)

        out = pl.pallas_call(
            kernel,
            out_shape=out_shape,
            grid_spec=pltpu.PrefetchScalarGridSpec(
                num_scalar_prefetch=0,
                grid=(n_layers,),
                in_specs=[
                    pl.BlockSpec((B, F), lambda l: (0, 0)),        # x (resident)
                    pl.BlockSpec((1, F, F), lambda l: (l, 0, 0)),  # per-layer weight (streamed)
                    pl.BlockSpec((1, 2, F), lambda l: (l, 0, 0)),  # per-layer BN gamma/beta
                    pl.BlockSpec((F, P), lambda l: (0, 0)),        # fused head weight
                    pl.BlockSpec((1, P), lambda l: (0, 0)),        # fused head bias
                ],
                out_specs=pl.BlockSpec((B, P), lambda l: (0, 0)),  # written on last layer only
                scratch_shapes=[pltpu.VMEM((B, F), jnp.float32)],  # running activation h
            ),
            compiler_params=pltpu.CompilerParams(
                dimension_semantics=("arbitrary",)),   # h carried across layers (sequential)
            cost_estimate=cost,
        )(x, feat_w, bn, head_w, head_b)

    mus = out[:, :L]
    if deterministic:
        return mus
    logvars = out[:, L:2 * L]
    return mus, logvars


def init_params(key, n_layers, in_features, latent_space_size):
    """Deterministic synthetic init mirroring the PyTorch module's __init__ shapes."""
    keys = jax.random.split(key, max(n_layers, 1) + 2)
    bound = 1.0 / jnp.sqrt(jnp.float32(in_features))
    if n_layers > 0:
        ws = []
        for i in range(n_layers):
            # nn.Linear(F, F, bias=False) default init: U(-1/sqrt(F), 1/sqrt(F)), shape (out, in)
            w = jax.random.uniform(keys[i], (in_features, in_features),
                                   minval=-bound, maxval=bound, dtype=jnp.float32)
            ws.append(w.T)  # pre-transpose to (in, out)
        feat_w = jnp.stack(ws, axis=0)
    else:
        feat_w = jnp.zeros((0, in_features, in_features), jnp.float32)

    bn_gamma = jnp.ones((n_layers, in_features), jnp.float32)
    bn_beta = jnp.zeros((n_layers, in_features), jnp.float32)
    bn = jnp.stack([bn_gamma, bn_beta], axis=1)            # (n_layers, 2, F)

    # Heads: weight ~ N(0, 0.033^2) of shape (latent, F); bias = 0.
    mu_w = 0.033 * jax.random.normal(keys[-2], (latent_space_size, in_features),
                                     dtype=jnp.float32)
    lv_w = 0.033 * jax.random.normal(keys[-1], (latent_space_size, in_features),
                                     dtype=jnp.float32)
    return {
        "feat_w": feat_w,
        "bn": bn,
        "mu_w": mu_w.T,                                    # (F, L)
        "mu_b": jnp.zeros((1, latent_space_size), jnp.float32),
        "lv_w": lv_w.T,                                    # (F, L)
        "lv_b": jnp.zeros((1, latent_space_size), jnp.float32),
    }


def reference_forward(x, params, *, n_layers, eps=1e-5):
    """Pure-JAX reference of the PyTorch forward (training-mode BN)."""
    h = x
    for i in range(n_layers):
        h = h @ params["feat_w"][i]
        mean = jnp.mean(h, axis=0, keepdims=True)
        var = jnp.mean((h - mean) ** 2, axis=0, keepdims=True)
        h = (h - mean) / jnp.sqrt(var + eps)
        h = h * params["bn"][i, 0][None, :] + params["bn"][i, 1][None, :]
        h = jnp.maximum(h, 0.0)
    mus = h @ params["mu_w"] + params["mu_b"]
    logvars = h @ params["lv_w"] + params["lv_b"]
    return mus, logvars


if __name__ == "__main__":
    n_layers = 2
    in_features = 32
    latent_space_size = 16
    batch = 8

    key = jax.random.PRNGKey(0)
    k_x, k_p = jax.random.split(key)
    x = jax.random.normal(k_x, (batch, in_features), dtype=jnp.float32)
    params = init_params(k_p, n_layers, in_features, latent_space_size)

    mus, logvars = feature_encoder_forward(x, params, n_layers=n_layers)
    jax.block_until_ready((mus, logvars))

    ref_mus, ref_logvars = reference_forward(x, params, n_layers=n_layers)
    assert mus.shape == (batch, latent_space_size)
    assert logvars.shape == (batch, latent_space_size)
    assert jnp.allclose(mus, ref_mus, atol=1e-4, rtol=1e-4)
    assert jnp.allclose(logvars, ref_logvars, atol=1e-4, rtol=1e-4)

    print("KERNEL_OK")
</pallas_src>

<mosaic_0001>
module attributes {stable_mosaic.version = 11 : i64} {
  func.func @_encoder_kernel(%arg0: i32, %arg1: memref<8x32xf32, #tpu.memory_space<vmem>>, %arg2: memref<1x32x32xf32, #tpu.memory_space<vmem>>, %arg3: memref<1x2x32xf32, #tpu.memory_space<vmem>>, %arg4: memref<32x128xf32, #tpu.memory_space<vmem>>, %arg5: memref<1x128xf32, #tpu.memory_space<vmem>>, %arg6: memref<8x128xf32, #tpu.memory_space<vmem>>, %arg7: memref<8x32xf32, #tpu.memory_space<vmem>>) attributes {dimension_semantics = [#tpu.dimension_semantics<arbitrary>], iteration_bounds = array<i64: 2>, scalar_prefetch = 0 : i64, scratch_operands = 1 : i64, tpu.core_type = #tpu.core_type<tc>, window_params = [{pipeline_mode = #tpu.pipeline_mode<synchronous>, transform_indices = @transform_0, window_bounds = array<i64: 8, 32>}, {transform_indices = @transform_1, window_bounds = array<i64: 1, 32, 32>}, {transform_indices = @transform_2, window_bounds = array<i64: 1, 2, 32>}, {pipeline_mode = #tpu.pipeline_mode<synchronous>, transform_indices = @transform_3, window_bounds = array<i64: 32, 128>}, {pipeline_mode = #tpu.pipeline_mode<synchronous>, transform_indices = @transform_4, window_bounds = array<i64: 1, 128>}, {pipeline_mode = #tpu.pipeline_mode<synchronous>, transform_indices = @transform_5, window_bounds = array<i64: 8, 128>}]} {
    %c0_i32 = arith.constant 0 : i32
    %0 = arith.cmpi eq, %arg0, %c0_i32 : i32
    %1 = arith.extui %0 : i1 to i32
    %c0_i32_0 = arith.constant 0 : i32
    %2 = arith.cmpi ne, %1, %c0_i32_0 : i32
    scf.if %2 {
      %c0_19 = arith.constant 0 : index
      %c0_20 = arith.constant 0 : index
      %38 = vector.load %arg1[%c0_19, %c0_20] : memref<8x32xf32, #tpu.memory_space<vmem>>, vector<8x32xf32>
      %c0_21 = arith.constant 0 : index
      %c0_22 = arith.constant 0 : index
      %39 = vector.load %arg7[%c0_21, %c0_22] : memref<8x32xf32, #tpu.memory_space<vmem>>, vector<8x32xf32>
      tpu.vector_store %arg7[%c0_21, %c0_22], %38 {strides = array<i32>} : memref<8x32xf32, #tpu.memory_space<vmem>>, vector<8x32xf32>,
    } else {
    }
    %c0 = arith.constant 0 : index
    %c0_1 = arith.constant 0 : index
    %3 = vector.load %arg7[%c0, %c0_1] : memref<8x32xf32, #tpu.memory_space<vmem>>, vector<8x32xf32>
    %c0_2 = arith.constant 0 : index
    %c0_3 = arith.constant 0 : index
    %c0_4 = arith.constant 0 : index
    %4 = vector.load %arg2[%c0_2, %c0_3, %c0_4] : memref<1x32x32xf32, #tpu.memory_space<vmem>>, vector<1x32x32xf32>
    %5 = vector.shape_cast %4 : vector<1x32x32xf32> to vector<32x32xf32>
    %cst = arith.constant dense<0.000000e+00> : vector<8x32xf32>
    %6 = tpu.matmul %3, %5, %cst {dimension_numbers = #tpu.dot_dimension_numbers<[1], [0], [0], [1], [0, 0, 1, 1], [], []>} : vector<8x32xf32>, vector<32x32xf32>, vector<8x32xf32> -> vector<8x32xf32>
    %cst_5 = arith.constant dense<0.000000e+00> : vector<32xf32>
    %7 = vector.multi_reduction <add>, %6, %cst_5 [0] : vector<8x32xf32> to vector<32xf32>
    %8 = vector.shape_cast %7 : vector<32xf32> to vector<1x32xf32>
    %cst_6 = arith.constant 1.250000e-01 : f32
    %9 = vector.broadcast %cst_6 : f32 to vector<1x32xf32>
    %10 = arith.mulf %8, %9 : vector<1x32xf32>
    %11 = arith.mulf %6, %6 : vector<8x32xf32>
    %cst_7 = arith.constant dense<0.000000e+00> : vector<32xf32>
    %12 = vector.multi_reduction <add>, %11, %cst_7 [0] : vector<8x32xf32> to vector<32xf32>
    %13 = vector.shape_cast %12 : vector<32xf32> to vector<1x32xf32>
    %cst_8 = arith.constant 1.250000e-01 : f32
    %14 = vector.broadcast %cst_8 : f32 to vector<1x32xf32>
    %15 = arith.mulf %13, %14 : vector<1x32xf32>
    %16 = arith.mulf %10, %10 : vector<1x32xf32>
    %17 = arith.subf %15, %16 : vector<1x32xf32>
    %c0_9 = arith.constant 0 : index
    %c0_10 = arith.constant 0 : index
    %c0_11 = arith.constant 0 : index
    %18 = vector.load %arg3[%c0_9, %c0_10, %c0_11] : memref<1x2x32xf32, #tpu.memory_space<vmem>>, vector<1x1x32xf32>
    %19 = vector.shape_cast %18 : vector<1x1x32xf32> to vector<1x32xf32>
    %c0_12 = arith.constant 0 : index
    %c1 = arith.constant 1 : index
    %c0_13 = arith.constant 0 : index
    %20 = vector.load %arg3[%c0_12, %c1, %c0_13] : memref<1x2x32xf32, #tpu.memory_space<vmem>>, vector<1x1x32xf32>
    %21 = vector.shape_cast %20 : vector<1x1x32xf32> to vector<1x32xf32>
    %cst_14 = arith.constant 9.99999974E-6 : f32
    %22 = vector.broadcast %cst_14 : f32 to vector<1x32xf32>
    %23 = arith.addf %17, %22 : vector<1x32xf32>
    %24 = math.rsqrt %23 : vector<1x32xf32>
    %25 = arith.mulf %19, %24 : vector<1x32xf32>
    %26 = arith.mulf %10, %25 : vector<1x32xf32>
    %27 = arith.subf %21, %26 : vector<1x32xf32>
    %28 = vector.broadcast %25 : vector<1x32xf32> to vector<8x32xf32>
    %29 = arith.mulf %6, %28 : vector<8x32xf32>
    %30 = vector.broadcast %27 : vector<1x32xf32> to vector<8x32xf32>
    %31 = arith.addf %29, %30 : vector<8x32xf32>
    %cst_15 = arith.constant 0.000000e+00 : f32
    %32 = vector.broadcast %cst_15 : f32 to vector<8x32xf32>
    %33 = arith.maximumf %31, %32 : vector<8x32xf32>
    %c0_16 = arith.constant 0 : index
    %c0_17 = arith.constant 0 : index
    %34 = vector.load %arg7[%c0_16, %c0_17] : memref<8x32xf32, #tpu.memory_space<vmem>>, vector<8x32xf32>
    tpu.vector_store %arg7[%c0_16, %c0_17], %33 {strides = array<i32>} : memref<8x32xf32, #tpu.memory_space<vmem>>, vector<8x32xf32>,
    %c1_i32 = arith.constant 1 : i32
    %35 = arith.cmpi eq, %arg0, %c1_i32 : i32
    %36 = arith.extui %35 : i1 to i32
    %c0_i32_18 = arith.constant 0 : i32
    %37 = arith.cmpi ne, %36, %c0_i32_18 : i32
    scf.if %37 {
      %c0_19 = arith.constant 0 : index
      %c0_20 = arith.constant 0 : index
      %38 = vector.load %arg4[%c0_19, %c0_20] : memref<32x128xf32, #tpu.memory_space<vmem>>, vector<32x128xf32>
      %cst_21 = arith.constant dense<0.000000e+00> : vector<8x128xf32>
      %39 = tpu.matmul %33, %38, %cst_21 {dimension_numbers = #tpu.dot_dimension_numbers<[1], [0], [0], [1], [0, 0, 1, 1], [], []>} : vector<8x32xf32>, vector<32x128xf32>, vector<8x128xf32> -> vector<8x128xf32>
      %c0_22 = arith.constant 0 : index
      %c0_23 = arith.constant 0 : index
      %40 = vector.load %arg5[%c0_22, %c0_23] : memref<1x128xf32, #tpu.memory_space<vmem>>, vector<1x128xf32>
      %41 = vector.broadcast %40 : vector<1x128xf32> to vector<8x128xf32>
      %42 = arith.addf %39, %41 : vector<8x128xf32>
      %c0_24 = arith.constant 0 : index
      %c0_25 = arith.constant 0 : index
      %43 = vector.load %arg6[%c0_24, %c0_25] : memref<8x128xf32, #tpu.memory_space<vmem>>, vector<8x128xf32>
      tpu.vector_store %arg6[%c0_24, %c0_25], %42 {strides = array<i32>} : memref<8x128xf32, #tpu.memory_space<vmem>>, vector<8x128xf32>,
    } else {
    }
    return
  }
  func.func @transform_0(%arg0: i32) -> (i32, i32) {
    %c0_i32 = arith.constant 0 : i32
    %c0_i32_0 = arith.constant 0 : i32
    %c0_i32_1 = arith.constant 0 : i32
    return %c0_i32, %c0_i32_0 : i32, i32
  }
  func.func @transform_1(%arg0: i32) -> (i32, i32, i32) {
    %c0_i32 = arith.constant 0 : i32
    %c0_i32_0 = arith.constant 0 : i32
    %c0_i32_1 = arith.constant 0 : i32
    return %arg0, %c0_i32, %c0_i32_0 : i32, i32, i32
  }
  func.func @transform_2(%arg0: i32) -> (i32, i32, i32) {
    %c0_i32 = arith.constant 0 : i32
    %c0_i32_0 = arith.constant 0 : i32
    %c0_i32_1 = arith.constant 0 : i32
    return %arg0, %c0_i32, %c0_i32_0 : i32, i32, i32
  }
  func.func @transform_3(%arg0: i32) -> (i32, i32) {
    %c0_i32 = arith.constant 0 : i32
    %c0_i32_0 = arith.constant 0 : i32
    %c0_i32_1 = arith.constant 0 : i32
    return %c0_i32, %c0_i32_0 : i32, i32
  }
  func.func @transform_4(%arg0: i32) -> (i32, i32) {
    %c0_i32 = arith.constant 0 : i32
    %c0_i32_0 = arith.constant 0 : i32
    %c0_i32_1 = arith.constant 0 : i32
    return %c0_i32, %c0_i32_0 : i32, i32
  }
  func.func @transform_5(%arg0: i32) -> (i32, i32) {
    %c0_i32 = arith.constant 0 : i32
    %c0_i32_0 = arith.constant 0 : i32
    %c0_i32_1 = arith.constant 0 : i32
    return %c0_i32, %c0_i32_0 : i32, i32
  }
}

</mosaic_0001>

<llo_original>
// kernel: tpu_custom_call.1
$region0: #{tpu_custom_call.1}
  #allocation0 [shape = 'u32[]', space=smem, size = 0x4, offset = 0x4, fixed_abs, tag = 'smem constant byte address 0x4 - core index']
  #allocation1 [shape = 'u32[72,128]{1,0:T(1,128)}', space=vmem, size = 0x9000, scoped, tag = 'internal scratch']
  #allocation2 [shape = 'f32[8,32]{1,0:T(8,128)}', space=vmem, size = 0x1000, scoped, tag = 'scratch operand']
  %s0 = inlined_call_operand.hbm [shape: f32[8,32], index: 0, kind: input, shape index: {}]
  %s1 = inlined_call_operand.hbm [shape: f32[2,32,32], index: 1, kind: input, shape index: {}]
  %s2 = inlined_call_operand.hbm [shape: f32[2,2,32], index: 2, kind: input, shape index: {}]
  %s3 = inlined_call_operand.hbm [shape: f32[32,128], index: 3, kind: input, shape index: {}]
  %s4 = inlined_call_operand.vmem [shape: f32[1,128], index: 4, kind: input, shape index: {}]
  %s5 = inlined_call_operand.hbm [shape: f32[8,128], index: 5, kind: output, shape index: {}]
  %s6 = sld [smem:[#allocation0]]
  $region77: #{tpu_custom_call.1} parent=0
    _
  %s8 = ssub.s32 1, %s6
  %s9 = scalar_select 0, %s8, %s6
  $region1: #{tpu_custom_call.1} parent=0
    #allocation3 [shape = 'u8[4096]{0}', space=vmem, size = 0x1000, scoped, tag = 'input window, operand 0, single buffered']
    #allocation4 [shape = 's32[2]{0}', space=sflag, size = 0x8, scoped, tag = 'scoped memory for tpu_custom_call.1']
    #allocation5 [shape = 's32[2]{0}', space=sflag, size = 0x8, scoped, tag = 'scoped memory for tpu_custom_call.1']
    #allocation6 [shape = 'u8[32768]{0}', space=vmem, size = 0x8000, scoped, tag = 'input window, operand 1']
    #allocation7 [shape = 's32[2]{0}', space=sflag, size = 0x8, scoped, tag = 'scoped memory for tpu_custom_call.1']
    #allocation8 [shape = 'u8[2048]{0}', space=vmem, size = 0x800, scoped, tag = 'input window, operand 2']
    #allocation9 [shape = 'u8[16384]{0}', space=vmem, size = 0x4000, scoped, tag = 'input window, operand 3, single buffered']
    #allocation10 [shape = 's32[1]{0}', space=sflag, size = 0x4, scoped, tag = 'scoped memory for tpu_custom_call.1']
    #allocation11 [shape = 'u8[4096]{0}', space=vmem, size = 0x1000, scoped, tag = 'output window, operand 0, single buffered']
    %10 = vsyncpa [#allocation4], 0
    %11 = vsyncpa [#allocation7], 0
    %s12 = scalar_lea.sflag [#allocation7], 1
    %13 = vsyncpa %s12, 0
    %14 = vsyncpa [#allocation10], 0
    %15 = vsyncpa [#allocation5], 0
    loop: start=0, step=1, limit=4
    $region2: #{tpu_custom_call.1} parent=1 // loop_pre_header
      _
    $region3: #{tpu_custom_call.1} parent=1 // loop_header
      %s17 = sphi 0, %s21
      %p18 = scmp.ge.s32.totalorder %s17, 4
      %s25 = sphi 0, %s25
      %s27 = sphi 0, %s25
      %s28 = sphi 0, %s27
      %s42 = sphi 0, %s28
      %s48 = sphi 0, %s50
      %s51 = sphi 0, %s48
      %s52 = sphi 0, %s51
      %s68 = sphi 0, %s52
      %s74 = sphi 0, %s76
      %s77 = sphi 0, %s74
      %s78 = sphi 0, %s77
      %s94 = sphi 0, %s78
      %s98 = sphi 0, %s98
      %s100 = sphi 0, %s98
      %s101 = sphi 0, %s100
      %s115 = sphi 0, %s101
      %s119 = sphi 0, %s119
      %s121 = sphi 0, %s119
      %s122 = sphi 0, %s121
      %s136 = sphi 0, %s122
      %s140 = sphi 0, %s140
      %s142 = sphi 0, %s140
      %s143 = sphi 0, %s142
      %s157 = sphi 0, %s143
    $region4: #{tpu_custom_call.1} parent=1 // loop_header_branch
      %20 = sbr.rel (%p18) target = $region8
    $region5: #{tpu_custom_call.1} parent=1 // loop_body
      %s22 = ssub.s32 %s17, 1
      %s23 = ssub.s32 %s17, 2
      %s24 = sadd.s32 %s17, 1
      %s26 = sadd.s32 %s25, 1
      %p29 = scmp.eq.s32.totalorder %s17, 1
      %p30 = scmp.ne.s32.totalorder %s25, %s27
      %p31 = scmp.eq.s32.totalorder %s17, 0
      %p32 = por %p30, %p31
      %p33 = scmp.ne.s32.totalorder %s25, %s27
      %p34 = scmp.eq.s32.totalorder %s22, 1
      %p35 = por %p33, %p34
      %p36 = scmp.ne.s32.totalorder %s27, %s28
      %p37 = scmp.eq.s32.totalorder %s22, 0
      %p38 = por %p36, %p37
      %p39 = scmp.ne.s32.totalorder %s27, %s28
      %p40 = scmp.eq.s32.totalorder %s23, 1
      %p41 = por %p39, %p40
      %p43 = scmp.ne.s32.totalorder %s28, %s42
      %p44 = scmp.eq.s32.totalorder %s23, 0
      %p45 = por %p43, %p44
      %s46 = ssub.s32 %s17, %s24
      %p47 = scmp.eq.s32.totalorder %s46, 0
      %s49 = sadd.s32 %s48, 1
      %s50 = scalar_select %p47, %s48, %s49
      %p53 = pneg %p47
      %p54 = scmp.eq.s32.totalorder %s17, 1
      %p55 = por %p53, %p54
      %p56 = scmp.ne.s32.totalorder %s48, %s51
      %p57 = scmp.eq.s32.totalorder %s17, 0
      %p58 = por %p56, %p57
      %p59 = scmp.ne.s32.totalorder %s48, %s51
      %p60 = scmp.eq.s32.totalorder %s22, 1
      %p61 = por %p59, %p60
      %p62 = scmp.ne.s32.totalorder %s51, %s52
      %p63 = scmp.eq.s32.totalorder %s22, 0
      %p64 = por %p62, %p63
      %p65 = scmp.ne.s32.totalorder %s51, %s52
      %p66 = scmp.eq.s32.totalorder %s23, 1
      %p67 = por %p65, %p66
      %p69 = scmp.ne.s32.totalorder %s52, %s68
      %p70 = scmp.eq.s32.totalorder %s23, 0
      %p71 = por %p69, %p70
      %s72 = ssub.s32 %s17, %s24
      %p73 = scmp.eq.s32.totalorder %s72, 0
      %s75 = sadd.s32 %s74, 1
      %s76 = scalar_select %p73, %s74, %s75
      %p79 = pneg %p73
      %p80 = scmp.eq.s32.totalorder %s17, 1
      %p81 = por %p79, %p80
      %p82 = scmp.ne.s32.totalorder %s74, %s77
      %p83 = scmp.eq.s32.totalorder %s17, 0
      %p84 = por %p82, %p83
      %p85 = scmp.ne.s32.totalorder %s74, %s77
      %p86 = scmp.eq.s32.totalorder %s22, 1
      %p87 = por %p85, %p86
      %p88 = scmp.ne.s32.totalorder %s77, %s78
      %p89 = scmp.eq.s32.totalorder %s22, 0
      %p90 = por %p88, %p89
      %p91 = scmp.ne.s32.totalorder %s77, %s78
      %p92 = scmp.eq.s32.totalorder %s23, 1
      %p93 = por %p91, %p92
      %p95 = scmp.ne.s32.totalorder %s78, %s94
      %p96 = scmp.eq.s32.totalorder %s23, 0
      %p97 = por %p95, %p96
      %s99 = sadd.s32 %s98, 1
      %p102 = scmp.eq.s32.totalorder %s17, 1
      %p103 = scmp.ne.s32.totalorder %s98, %s100
      %p104 = scmp.eq.s32.totalorder %s17, 0
      %p105 = por %p103, %p104
      %p106 = scmp.ne.s32.totalorder %s98, %s100
      %p107 = scmp.eq.s32.totalorder %s22, 1
      %p108 = por %p106, %p107
      %p109 = scmp.ne.s32.totalorder %s100, %s101
      %p110 = scmp.eq.s32.totalorder %s22, 0
      %p111 = por %p109, %p110
      %p112 = scmp.ne.s32.totalorder %s100, %s101
      %p113 = scmp.eq.s32.totalorder %s23, 1
      %p114 = por %p112, %p113
      %p116 = scmp.ne.s32.totalorder %s101, %s115
      %p117 = scmp.eq.s32.totalorder %s23, 0
      %p118 = por %p116, %p117
      %s120 = sadd.s32 %s119, 1
      %p123 = scmp.eq.s32.totalorder %s17, 1
      %p124 = scmp.ne.s32.totalorder %s119, %s121
      %p125 = scmp.eq.s32.totalorder %s17, 0
      %p126 = por %p124, %p125
      %p127 = scmp.ne.s32.totalorder %s119, %s121
      %p128 = scmp.eq.s32.totalorder %s22, 1
      %p129 = por %p127, %p128
      %p130 = scmp.ne.s32.totalorder %s121, %s122
      %p131 = scmp.eq.s32.totalorder %s22, 0
      %p132 = por %p130, %p131
      %p133 = scmp.ne.s32.totalorder %s121, %s122
      %p134 = scmp.eq.s32.totalorder %s23, 1
      %p135 = por %p133, %p134
      %p137 = scmp.ne.s32.totalorder %s122, %s136
      %p138 = scmp.eq.s32.totalorder %s23, 0
      %p139 = por %p137, %p138
      %s141 = sadd.s32 %s140, 1
      %p144 = scmp.eq.s32.totalorder %s17, 1
      %p145 = scmp.ne.s32.totalorder %s140, %s142
      %p146 = scmp.eq.s32.totalorder %s17, 0
      %p147 = por %p145, %p146
      %p148 = scmp.ne.s32.totalorder %s140, %s142
      %p149 = scmp.eq.s32.totalorder %s22, 1
      %p150 = por %p148, %p149
      %p151 = scmp.ne.s32.totalorder %s142, %s143
      %p152 = scmp.eq.s32.totalorder %s22, 0
      %p153 = por %p151, %p152
      %p154 = scmp.ne.s32.totalorder %s142, %s143
      %p155 = scmp.eq.s32.totalorder %s23, 1
      %p156 = por %p154, %p155
      %p158 = scmp.ne.s32.totalorder %s143, %s157
      %p159 = scmp.eq.s32.totalorder %s23, 0
      %p160 = por %p158, %p159
      %p161 = scmp.le.s32.totalorder 1, %s17
      %p162 = scmp.lt.s32.totalorder %s17, 3
      %p163 = pnand %p161, %p162
      %p164 = pneg %p163
      // Predicated region
      $region9: #{tpu_custom_call.1} parent=5 // pred_check
        _
      $region10: #{tpu_custom_call.1} parent=5 // pred_check_branch
        %166 = sbr.rel (%p163) target = $region12
      $region11: #{tpu_custom_call.1} parent=5 // pred_region
        %s167 = ssub.s32 %s17, 1
        // Predicated region
        $region13: #{tpu_custom_call.1} parent=11 // pred_check
          %p168 = pneg %p38
        $region14: #{tpu_custom_call.1} parent=11 // pred_check_branch
          %170 = sbr.rel (%p168) target = $region16
        $region15: #{tpu_custom_call.1} parent=11 // pred_region
          %172 = vsyncadd [#allocation4], 0
          %s174 = sshll.u32 %s0, 4
          %s175 = int_to_ptr.hbm [resolvable:$true] %s174
          %s176 = sshll.u32 [#allocation3], 4
          %s177 = int_to_ptr.vmem [resolvable:$true] %s176
          %179 = dma.hbm_to_vmem [thread:$0]  %s175, 128, %s177, [#allocation4]
        $region16: #{tpu_custom_call.1} parent=11 // pred_fallthru
          _
        // Predicated region
        $region17: #{tpu_custom_call.1} parent=11 // pred_check
          %p180 = pneg %p111
        $region18: #{tpu_custom_call.1} parent=11 // pred_check_branch
          %182 = sbr.rel (%p180) target = $region20
        $region19: #{tpu_custom_call.1} parent=11 // pred_region
          %184 = vsyncadd [#allocation10], 0
          %s185 = sshll.u32 %s3, 4
          %s186 = int_to_ptr.hbm [resolvable:$true] %s185
          %s187 = sshll.u32 [#allocation9], 4
          %s188 = int_to_ptr.vmem [resolvable:$true] %s187
          %193 = dma.hbm_to_vmem [thread:$0]  %s186, 512, %s188, [#allocation10], 128, 128, 8
        $region20: #{tpu_custom_call.1} parent=11 // pred_fallthru
          _
        // Predicated region
        $region21: #{tpu_custom_call.1} parent=11 // pred_check
          %p194 = pneg %p132
        $region22: #{tpu_custom_call.1} parent=11 // pred_check_branch
          %196 = sbr.rel (%p194) target = $region24
        $region23: #{tpu_custom_call.1} parent=11 // pred_region
          _
        $region24: #{tpu_custom_call.1} parent=11 // pred_fallthru
          _
      $region12: #{tpu_custom_call.1} parent=5 // pred_fallthru
        _
      %p197 = scmp.lt.s32.totalorder %s17, 2
      // Predicated region
      $region25: #{tpu_custom_call.1} parent=5 // pred_check
        %p198 = pneg %p197
      $region26: #{tpu_custom_call.1} parent=5 // pred_check_branch
        %200 = sbr.rel (%p198) target = $region28
      $region27: #{tpu_custom_call.1} parent=5 // pred_region
        // Predicated region
        $region29: #{tpu_custom_call.1} parent=27 // pred_check
          %p201 = pneg %p58
        $region30: #{tpu_custom_call.1} parent=27 // pred_check_branch
          %203 = sbr.rel (%p201) target = $region32
        $region31: #{tpu_custom_call.1} parent=27 // pred_region
          %s204 = sand.u32 %s17, 1
          %s205 = scalar_lea.sflag [#allocation7], %s204
          %s206 = sand.u32 %s48, 1
          %s207 = smul.addr %s206, 32
          %s208 = scalar_lea.vmem [#allocation6], %s207
          %210 = vsyncadd %s205, 0
          %s211 = smul.addr %s17, 4
          %s212 = smul.addr %s211, 8
          %s213 = scalar_lea.hbm %s1, %s212
          %s214 = sshll.u32 %s213, 4
          %s215 = int_to_ptr.hbm [resolvable:$true] %s214
          %s216 = sshll.u32 %s208, 4
          %s217 = int_to_ptr.vmem [resolvable:$true] %s216
          %222 = dma.hbm_to_vmem [thread:$0]  %s215, 512, %s217, %s205, 128, 128, 8
        $region32: #{tpu_custom_call.1} parent=27 // pred_fallthru
          _
        // Predicated region
        $region33: #{tpu_custom_call.1} parent=27 // pred_check
          %p223 = pneg %p84
        $region34: #{tpu_custom_call.1} parent=27 // pred_check_branch
          %225 = sbr.rel (%p223) target = $region36
        $region35: #{tpu_custom_call.1} parent=27 // pred_region
          %s226 = sand.u32 %s17, 1
          %s227 = scalar_lea.sflag [#allocation7], %s226
          %s228 = sand.u32 %s74, 1
          %s229 = smul.addr %s228, 2
          %s230 = scalar_lea.vmem [#allocation8], %s229
          %232 = vsyncadd %s227, 0
          %s233 = smul.addr %s17, 2
          %s234 = scalar_lea.hbm %s2, %s233
          %s236 = sshll.u32 %s234, 4
          %s237 = int_to_ptr.hbm [resolvable:$true] %s236
          %s238 = sshll.u32 %s230, 4
          %s239 = int_to_ptr.vmem [resolvable:$true] %s238
          %241 = dma.hbm_to_vmem [thread:$0]  %s237, 32, %s239, %s227
        $region36: #{tpu_custom_call.1} parent=27 // pred_fallthru
          _
      $region28: #{tpu_custom_call.1} parent=5 // pred_fallthru
        _
      %p242 = scmp.le.s32.totalorder 1, %s17
      %p243 = scmp.lt.s32.totalorder %s17, 3
      %p244 = pnand %p242, %p243
      %p245 = pneg %p244
      // Predicated region
      $region37: #{tpu_custom_call.1} parent=5 // pred_check
        _
      $region38: #{tpu_custom_call.1} parent=5 // pred_check_branch
        %247 = sbr.rel (%p244) target = $region40
      $region39: #{tpu_custom_call.1} parent=5 // pred_region
        %s248 = ssub.s32 %s17, 1
        // Predicated region
        $region41: #{tpu_custom_call.1} parent=39 // pred_check
          %p249 = pneg %p38
        $region42: #{tpu_custom_call.1} parent=39 // pred_check_branch
          %251 = sbr.rel (%p249) target = $region44
        $region43: #{tpu_custom_call.1} parent=39 // pred_region
          %253 = dma.done [#allocation4], 128
        $region44: #{tpu_custom_call.1} parent=39 // pred_fallthru
          _
        %s254 = sand.u32 %s22, 1
        %s255 = scalar_lea.sflag [#allocation7], %s254
        %s256 = sand.u32 %s51, 1
        %s257 = smul.addr %s256, 32
        %s258 = scalar_lea.vmem [#allocation6], %s257
        // Predicated region
        $region45: #{tpu_custom_call.1} parent=39 // pred_check
          %p259 = pneg %p64
        $region46: #{tpu_custom_call.1} parent=39 // pred_check_branch
          %261 = sbr.rel (%p259) target = $region48
        $region47: #{tpu_custom_call.1} parent=39 // pred_region
          %263 = dma.done %s255, 512
        $region48: #{tpu_custom_call.1} parent=39 // pred_fallthru
          _
        %s264 = sand.u32 %s22, 1
        %s265 = scalar_lea.sflag [#allocation7], %s264
        %s266 = sand.u32 %s77, 1
        %s267 = smul.addr %s266, 2
        %s268 = scalar_lea.vmem [#allocation8], %s267
        // Predicated region
        $region49: #{tpu_custom_call.1} parent=39 // pred_check
          %p269 = pneg %p90
        $region50: #{tpu_custom_call.1} parent=39 // pred_check_branch
          %271 = sbr.rel (%p269) target = $region52
        $region51: #{tpu_custom_call.1} parent=39 // pred_region
          %273 = dma.done %s265, 32
        $region52: #{tpu_custom_call.1} parent=39 // pred_fallthru
          _
        // Predicated region
        $region53: #{tpu_custom_call.1} parent=39 // pred_check
          %p274 = pneg %p111
        $region54: #{tpu_custom_call.1} parent=39 // pred_check_branch
          %276 = sbr.rel (%p274) target = $region56
        $region55: #{tpu_custom_call.1} parent=39 // pred_region
          %278 = dma.done [#allocation10], 512
        $region56: #{tpu_custom_call.1} parent=39 // pred_fallthru
          _
        %p279 = pneg %p38
        %p280 = pneg %p35
        %s281 = sand.u32 %s22, 1
        %s282 = scalar_lea.sflag [#allocation7], %s281
        %s283 = sand.u32 %s51, 1
        %s284 = smul.addr %s283, 32
        %s285 = scalar_lea.vmem [#allocation6], %s284
        %p286 = pneg %p64
        %p287 = pneg %p61
        %s288 = sand.u32 %s22, 1
        %s289 = scalar_lea.sflag [#allocation7], %s288
        %s290 = sand.u32 %s77, 1
        %s291 = smul.addr %s290, 2
        %s292 = scalar_lea.vmem [#allocation8], %s291
        %p293 = pneg %p90
        %p294 = pneg %p87
        %p295 = pneg %p111
        %p296 = pneg %p108
        %p297 = pneg %p132
        %p298 = pneg %p129
        %p299 = pneg %p153
        %p300 = pneg %p150
        %p301 = scmp.eq.s32.totalorder %s22, 0
        // Predicated region
        $region57: #{tpu_custom_call.1} parent=39 // pred_check
          %p302 = pneg %p301
        $region58: #{tpu_custom_call.1} parent=39 // pred_check_branch
          %304 = sbr.rel (%p302) target = $region60
        $region59: #{tpu_custom_call.1} parent=39 // pred_region
          %v305 = vld [vmem:[#allocation3] sm:$0xff]
          %vm306 = vcmask 261120
          %307 = vst.msk [vmem:[#allocation2] sm:$0xff] %vm306, %v305
        $region60: #{tpu_custom_call.1} parent=39 // pred_fallthru
          _
        %v308 = vld [vmem:[#allocation2] sm:$0xff]
        %v309 = vld [vmem:[%s258] sm:$0xff]
        %v310 = vld [vmem:[%s258 + $0x8] sm:$0xff]
        %v311 = vld [vmem:[%s258 + $0x10] sm:$0xff]
        %v312 = vld [vmem:[%s258 + $0x18] sm:$0xff]
        %vm313 = vcmask 261120
        %v315 = vsel %vm313, %v308, 0
        %317 = vmatpush.msra.mxu0 0.0
        %318 = vmatpush.msra.mxu0 0.0
        %319 = vmatpush.msra.mxu0 0.0
        %320 = vmatpush.msra.mxu0 0.0
        %321 = vmatpush.msra.mxu0 0.0
        %322 = vmatpush.msra.mxu0 0.0
        %323 = vmatpush.msra.mxu0 0.0
        %324 = vmatpush.msra.mxu0 0.0
        %325 = vmatpush.msra.mxu0 0.0
        %326 = vmatpush.msra.mxu0 0.0
        %327 = vmatpush.msra.mxu0 0.0
        %328 = vmatpush.msra.mxu0 0.0
        %329 = vmatpush.msra.mxu0 %v312
        %330 = vmatpush.msra.mxu0 %v311
        %331 = vmatpush.msra.mxu0 %v310
        %332 = vmatpush.msra.mxu0 %v309
        %333 = vmatmul.f32.gmra.mxu0 %v315
        %v334 = vpop.f32.mrf.mxu0
        %v335 = vadd.f32 0.0, %v334
        %336 = vdwg.mxu0
        %v337 = vsel %vm313, %v335, 0.0
        %v338 = vrot.slane %v337, 4
        %v339 = vadd.f32 %v337, %v338
        %v340 = vrot.slane %v339, 2
        %v341 = vadd.f32 %v339, %v340
        %v342 = vrot.slane %v341, 1
        %v343 = vadd.f32 %v341, %v342
        %v344 = vmul.f32 %v343, 0.125
        %v345 = vmul.f32 %v335, %v335
        %v346 = vsel %vm313, %v345, 0.0
        %v347 = vrot.slane %v346, 4
        %v348 = vadd.f32 %v346, %v347
        %v349 = vrot.slane %v348, 2
        %v350 = vadd.f32 %v348, %v349
        %v351 = vrot.slane %v350, 1
        %v352 = vadd.f32 %v350, %v351
        %v353 = vmul.f32 %v352, 0.125
        %v354 = vmul.f32 %v344, %v344
        %v355 = vsub.f32 %v353, %v354
        %v356 = vld [vmem:[%s268] sm:$0x1]
        %v357 = vld [vmem:[%s268 + $0x1] sm:$0x1]
        %v358 = vadd.f32 %v355, 1e-05
        %v359 = vrsqrt.pop %v358
        %v360 = vmul.f32 %v359, %v358
        %v361 = vmul.f32 %v360, %v359
        %v362 = vmul.f32 0.5, %v361
        %v363 = vsub.f32 1.5, %v362
        %v364 = vmul.f32 %v359, %v363
        %vm365 = vweird.f32 %v358
        %vm366 = vweird.f32 %v359
        %vm367 = vmor %vm365, %vm366
        %v368 = vsel %vm367, %v359, %v364
        %v369 = vmul.f32 %v356, %v368
        %v370 = vmul.f32 %v344, %v369
        %v371 = vsub.f32 %v357, %v370
        %v372 = vperm.slane %v369, 0
        %v373 = vmul.f32 %v335, %v372
        %v374 = vperm.slane %v371, 0
        %v375 = vadd.f32 %v373, %v374
        %v376 = vmax.f32 %v375, 0.0
        %377 = vst.msk [vmem:[#allocation2] sm:$0xff] %vm313, %v376
        %p378 = scmp.eq.s32.totalorder %s22, 1
        // Predicated region
        $region61: #{tpu_custom_call.1} parent=39 // pred_check
          %p379 = pneg %p378
        $region62: #{tpu_custom_call.1} parent=39 // pred_check_branch
          %381 = sbr.rel (%p379) target = $region64
        $region63: #{tpu_custom_call.1} parent=39 // pred_region
          %v382 = vld [vmem:[#allocation9] sm:$0xff]
          %v383 = vld [vmem:[#allocation9 + $0x8] sm:$0xff]
          %v384 = vld [vmem:[#allocation9 + $0x10] sm:$0xff]
          %v385 = vld [vmem:[#allocation9 + $0x18] sm:$0xff]
          %v386 = vld [vmem:[%s4] sm:$0x1]
          %v388 = vperm.slane %v386, 0
          %v391 = vsel %vm313, %v376, 0
          %393 = vmatpush.msra.mxu0 0.0
          %394 = vmatpush.msra.mxu0 0.0
          %395 = vmatpush.msra.mxu0 0.0
          %396 = vmatpush.msra.mxu0 0.0
          %397 = vmatpush.msra.mxu0 0.0
          %398 = vmatpush.msra.mxu0 0.0
          %399 = vmatpush.msra.mxu0 0.0
          %400 = vmatpush.msra.mxu0 0.0
          %401 = vmatpush.msra.mxu0 0.0
          %402 = vmatpush.msra.mxu0 0.0
          %403 = vmatpush.msra.mxu0 0.0
          %404 = vmatpush.msra.mxu0 0.0
          %405 = vmatpush.msra.mxu0 %v385
          %406 = vmatpush.msra.mxu0 %v384
          %407 = vmatpush.msra.mxu0 %v383
          %408 = vmatpush.msra.mxu0 %v382
          %409 = vmatmul.f32.gmra.mxu0 %v391
          %v410 = vpop.f32.mrf.mxu0
          %v411 = vadd.f32 %v388, %v410
          %412 = vdwg.mxu0
          %413 = vst [vmem:[#allocation11] sm:$0xff] %v411
        $region64: #{tpu_custom_call.1} parent=39 // pred_fallthru
          _
        // Predicated region
        $region65: #{tpu_custom_call.1} parent=39 // pred_check
          %p414 = pneg %p150
        $region66: #{tpu_custom_call.1} parent=39 // pred_check_branch
          %416 = sbr.rel (%p414) target = $region68
        $region67: #{tpu_custom_call.1} parent=39 // pred_region
          %418 = vsyncadd [#allocation5], 0
          %s420 = sshll.u32 [#allocation11], 4
          %s421 = int_to_ptr.vmem [resolvable:$true] %s420
          %s422 = sshll.u32 %s5, 4
          %s423 = int_to_ptr.hbm [resolvable:$true] %s422
          %425 = dma.vmem_to_hbm [thread:$0]  %s421, 128, %s423, [#allocation5]
        $region68: #{tpu_custom_call.1} parent=39 // pred_fallthru
          _
        // Predicated region
        $region69: #{tpu_custom_call.1} parent=39 // pred_check
          %p426 = pneg %p150
        $region70: #{tpu_custom_call.1} parent=39 // pred_check_branch
          %428 = sbr.rel (%p426) target = $region72
        $region71: #{tpu_custom_call.1} parent=39 // pred_region
          %430 = dma.done [#allocation5], 128
        $region72: #{tpu_custom_call.1} parent=39 // pred_fallthru
          _
      $region40: #{tpu_custom_call.1} parent=5 // pred_fallthru
        _
      %p431 = scmp.le.s32.totalorder 2, %s17
      // Predicated region
      $region73: #{tpu_custom_call.1} parent=5 // pred_check
        %p432 = pneg %p431
      $region74: #{tpu_custom_call.1} parent=5 // pred_check_branch
        %434 = sbr.rel (%p432) target = $region76
      $region75: #{tpu_custom_call.1} parent=5 // pred_region
        %s435 = ssub.s32 %s17, 2
      $region76: #{tpu_custom_call.1} parent=5 // pred_fallthru
        _
    $region6: #{tpu_custom_call.1} parent=1 // loop_footer
      %s21 = sadd.s32 1, %s17
    $region7: #{tpu_custom_call.1} parent=1 // loop_footer_branch
      %16 = sbr.rel target = $region3
    $region8: #{tpu_custom_call.1} parent=1 // loop_exit
      _
    %436 = vsyncpa [#allocation4], 1
    %s437 = scalar_lea.sflag [#allocation4], 1
    %438 = vsyncpa %s437, 1
    %439 = vsyncpa [#allocation7], 1
    %s440 = scalar_lea.sflag [#allocation7], 1
    %441 = vsyncpa %s440, 1
    %442 = vsyncpa [#allocation10], 1
    %443 = vsyncpa [#allocation5], 1
    %s444 = scalar_lea.sflag [#allocation5], 1
    %445 = vsyncpa %s444, 1

</llo_original>
